<compile_context>
chip_gen: v7x
topology: tpu7x:2x2x1
jax: 0.10.0
libtpu: 0.0.40
codegen_flags: <defaults>
</compile_context>

<pallas_src>
import jax
import jax.numpy as jnp
from jax.experimental import pallas as pl
from jax.experimental.pallas import tpu as pltpu


_X_RESIDENT_BUDGET = 8 << 20   # single-buffer cap for a VMEM-resident x
_VMEM_BUDGET = 24 << 20        # total pipeline footprint target (v7x-safe)


def _round_up(x, m):
    return ((x + m - 1) // m) * m


def _choose_blocks(extent, max_block, gran):
    """Split `extent` into equal-ish blocks of size <= ~max_block, each a
    multiple of `gran`; zero padding is < n_blocks*gran (independent of the
    block size), and the block size divides the padded extent exactly."""
    padded0 = _round_up(max(int(extent), 1), gran)
    n_blk = max(1, -(-padded0 // max(int(max_block), gran)))
    blk = _round_up(-(-padded0 // n_blk), gran)
    return blk, blk * n_blk


def _matmul_resident_kernel(w_ref, x_ref, o_ref):
    # Single K pass: x is fully VMEM-resident (its block index is constant, so
    # the pipeline DMAs it from HBM once); no accumulator phases needed.
    o_ref[...] = jnp.dot(
        w_ref[...], x_ref[...], preferred_element_type=jnp.float32
    ).astype(o_ref.dtype)


def _matmul_tiled_kernel(w_ref, x_ref, o_ref, acc_ref):
    # K-axis accumulating matmul on the MXU with an f32 scratch accumulator.
    @pl.when(pl.program_id(2) == 0)
    def _():
        acc_ref[...] = jnp.zeros_like(acc_ref)

    acc_ref[...] += jnp.dot(
        w_ref[...], x_ref[...], preferred_element_type=jnp.float32
    )

    @pl.when(pl.program_id(2) == pl.num_programs(2) - 1)
    def _():
        o_ref[...] = acc_ref[...].astype(o_ref.dtype)


def _aggregate_resident(w_p, x_p, out_dtype, tm, vmem_limit_bytes):
    Mp, Kp = w_p.shape
    _, Np = x_p.shape
    bytes_accessed = (
        w_p.size * w_p.dtype.itemsize
        + x_p.size * x_p.dtype.itemsize
        + Mp * Np * jnp.dtype(out_dtype).itemsize
    )
    return pl.pallas_call(
        _matmul_resident_kernel,
        out_shape=jax.ShapeDtypeStruct((Mp, Np), out_dtype),
        grid_spec=pltpu.PrefetchScalarGridSpec(
            num_scalar_prefetch=0,
            grid=(Mp // tm,),
            in_specs=[
                pl.BlockSpec((tm, Kp), lambda i: (i, 0)),   # W streamed over M
                pl.BlockSpec((Kp, Np), lambda i: (0, 0)),   # x resident (1 DMA)
            ],
            out_specs=pl.BlockSpec((tm, Np), lambda i: (i, 0)),
        ),
        compiler_params=pltpu.CompilerParams(
            dimension_semantics=("parallel",),
            vmem_limit_bytes=vmem_limit_bytes,
        ),
        cost_estimate=pl.CostEstimate(
            flops=2 * Mp * Kp * Np,
            transcendentals=0,
            bytes_accessed=bytes_accessed,
        ),
    )(w_p, x_p)


def _aggregate_tiled(w_p, x_p, out_dtype, tm, tn, tk, vmem_limit_bytes):
    Mp, Kp = w_p.shape
    _, Np = x_p.shape
    bytes_accessed = (
        w_p.size * w_p.dtype.itemsize
        + x_p.size * x_p.dtype.itemsize
        + Mp * Np * jnp.dtype(out_dtype).itemsize
    )
    return pl.pallas_call(
        _matmul_tiled_kernel,
        out_shape=jax.ShapeDtypeStruct((Mp, Np), out_dtype),
        grid_spec=pltpu.PrefetchScalarGridSpec(
            num_scalar_prefetch=0,
            grid=(Mp // tm, Np // tn, Kp // tk),
            in_specs=[
                pl.BlockSpec((tm, tk), lambda i, j, k: (i, k)),
                pl.BlockSpec((tk, tn), lambda i, j, k: (k, j)),
            ],
            out_specs=pl.BlockSpec((tm, tn), lambda i, j, k: (i, j)),
            scratch_shapes=[pltpu.VMEM((tm, tn), jnp.float32)],
        ),
        compiler_params=pltpu.CompilerParams(
            dimension_semantics=("parallel", "parallel", "arbitrary"),
            vmem_limit_bytes=vmem_limit_bytes,
        ),
        cost_estimate=pl.CostEstimate(
            flops=2 * Mp * Kp * Np,
            transcendentals=0,
            bytes_accessed=bytes_accessed,
        ),
    )(w_p, x_p)


def differential_layer(
    src_ids,
    dst_ids,
    num_src,
    num_dst,
    src_emb,
    e_att,
    is_close=False,
    compute_dtype=jnp.bfloat16,
    max_tm=512,
    max_tn=512,
    max_tk=1024,
    x_resident_budget_bytes=_X_RESIDENT_BUDGET,
):
    """JAX/Pallas equivalent of DifferentialLayer.forward.

    src_ids, dst_ids : int32 [E]  edge list of the message-flow graph
    src_emb          : f32 [num_src, emb_sz]
    e_att            : f32 [E] or [E, 1]  scalar attention per edge
                       (broadcast over emb_sz — matches fn.src_mul_edge)
    """
    out_dtype = src_emb.dtype
    cdt = jnp.dtype(compute_dtype)
    cbytes = cdt.itemsize
    obytes = jnp.dtype(out_dtype).itemsize

    M, K, N = int(num_dst), int(num_src), int(src_emb.shape[1])

    # Padding granularity is decoupled from tile size:
    #   M: sublane dim of W (16 for bf16 packing, 8 for f32)
    #   K: lane dim of W / sublane dim of x -> 128
    #   N: lane dim of x / output          -> 128 (lane-dense, unmasked vst)
    # Prefer 256-granular K/N when it adds no padding (full v6e/v7x MXU width).
    sub = 16 if cbytes == 2 else 8
    gran_k = 256 if _round_up(K, 128) % 256 == 0 else 128
    gran_n = 256 if _round_up(N, 128) % 256 == 0 else 128

    tk, Kp = _choose_blocks(K, max_tk, gran_k)
    tn, Np = _choose_blocks(N, max_tn, gran_n)

    # Resident-x fast path: x is DMA'd once, W and the output are streamed.
    x_bytes = Kp * Np * cbytes
    resident = x_bytes <= int(x_resident_budget_bytes)
    if resident:
        per_row = 2 * Kp * cbytes + 2 * Np * obytes   # W-in + out, per M row
        tm_cap = (_VMEM_BUDGET - 2 * x_bytes) // per_row
        resident = tm_cap >= sub

    if resident:
        tm, Mp = _choose_blocks(M, min(max_tm, tm_cap), sub)
        # v7x megacore: ensure the (only) parallel grid axis has >= 2 blocks.
        if Mp // tm == 1 and Mp >= 2 * sub:
            tm, Mp = _choose_blocks(M, max(sub, tm // 2), sub)
        tk, tn = Kp, Np
        footprint = 2 * tm * Kp * cbytes + 2 * x_bytes + 2 * tm * Np * obytes
    else:
        tm, Mp = _choose_blocks(M, max_tm, sub)
        footprint = (
            (2 * tm * tk + 2 * tk * tn) * cbytes
            + 2 * tm * tn * obytes
            + tm * tn * 4
        )
    # Explicit scoped-VMEM limit: above v5e's 16 MiB default when needed, but
    # comfortably under v7x's 64 MiB physical VMEM.
    vmem_limit = int(min(max(2 * footprint, 32 << 20), 48 << 20))

    # Dense weight matrix built once, at the padded shape, directly in the
    # compute dtype (single materialization — no separate f32 copy).
    # NOTE: with compute_dtype=bfloat16 both the multi-edge e_att accumulation
    # and src_emb are quantized; pass compute_dtype=jnp.float32 for exactness.
    e_flat = jnp.reshape(e_att, (-1,))
    vals = jnp.ones(e_flat.shape, cdt) if is_close else e_flat.astype(cdt)
    w_p = jnp.zeros((Mp, Kp), cdt).at[dst_ids, src_ids].add(vals)

    # Feature matrix: cast then pad once (zero rows hit zero W columns).
    x_p = src_emb.astype(cdt)
    if (Kp, Np) != (K, N):
        x_p = jnp.pad(x_p, ((0, Kp - K), (0, Np - N)))

    if resident:
        out = _aggregate_resident(w_p, x_p, out_dtype, tm, vmem_limit)
    else:
        out = _aggregate_tiled(w_p, x_p, out_dtype, tm, tn, tk, vmem_limit)

    if (Mp, Np) != (M, N):
        out = out[:M, :N]
    return out


def _reference(src_ids, dst_ids, num_dst, src_emb, e_att, is_close):
    e_att = jnp.reshape(e_att, (-1, 1)).astype(src_emb.dtype)
    msg = src_emb[src_ids]
    if not is_close:
        msg = msg * e_att
    return (
        jnp.zeros((num_dst, src_emb.shape[1]), src_emb.dtype)
        .at[dst_ids]
        .add(msg)
    )


if __name__ == "__main__":
    num_src, num_dst, emb_sz, num_edges = 16, 8, 32, 48

    key = jax.random.PRNGKey(0)
    k1, k2, k3, k4 = jax.random.split(key, 4)
    src_ids = jax.random.randint(k1, (num_edges,), 0, num_src, dtype=jnp.int32)
    dst_ids = jax.random.randint(k2, (num_edges,), 0, num_dst, dtype=jnp.int32)
    src_emb = jax.random.normal(k3, (num_src, emb_sz), dtype=jnp.float32)
    e_att = jax.random.normal(k4, (num_edges, 1), dtype=jnp.float32)

    ref_att = _reference(src_ids, dst_ids, num_dst, src_emb, e_att, False)
    ref_close = _reference(src_ids, dst_ids, num_dst, src_emb, e_att, True)

    # is_close=False branch (src_mul_edge + sum), bf16 compute / f32 MXU acc,
    # resident-x fast path.
    out_att = differential_layer(
        src_ids, dst_ids, num_src, num_dst, src_emb, e_att, is_close=False
    )
    out_att = jax.block_until_ready(out_att)
    assert out_att.shape == (num_dst, emb_sz)
    assert out_att.dtype == src_emb.dtype
    assert jnp.allclose(out_att, ref_att, atol=1e-1, rtol=5e-2)

    # is_close=True branch (copy_u + sum).
    out_close = differential_layer(
        src_ids, dst_ids, num_src, num_dst, src_emb, e_att, is_close=True
    )
    out_close = jax.block_until_ready(out_close)
    assert jnp.allclose(out_close, ref_close, atol=1e-1, rtol=5e-2)

    # Full-precision compute path: padding is sum-neutral, so this is exact.
    out_f32 = differential_layer(
        src_ids, dst_ids, num_src, num_dst, src_emb, e_att,
        is_close=False, compute_dtype=jnp.float32,
    )
    out_f32 = jax.block_until_ready(out_f32)
    assert jnp.allclose(out_f32, ref_att, atol=1e-4, rtol=1e-4)

    # Force the tiled (large K*N) fallback path to exercise that kernel too.
    out_tiled = differential_layer(
        src_ids, dst_ids, num_src, num_dst, src_emb, e_att,
        is_close=False, x_resident_budget_bytes=0,
    )
    out_tiled = jax.block_until_ready(out_tiled)
    assert jnp.allclose(out_tiled, ref_att, atol=1e-1, rtol=5e-2)

    print("KERNEL_OK")
</pallas_src>

<mosaic_0001>
module attributes {stable_mosaic.version = 11 : i64} {
  func.func @_matmul_resident_kernel(%arg0: i32, %arg1: memref<16x128xbf16, #tpu.memory_space<vmem>>, %arg2: memref<128x128xbf16, #tpu.memory_space<vmem>>, %arg3: memref<16x128xf32, #tpu.memory_space<vmem>>) attributes {dimension_semantics = [#tpu.dimension_semantics<parallel>], iteration_bounds = array<i64: 1>, scalar_prefetch = 0 : i64, scratch_operands = 0 : i64, tpu.core_type = #tpu.core_type<tc>, window_params = [{transform_indices = @transform_0, window_bounds = array<i64: 16, 128>}, {pipeline_mode = #tpu.pipeline_mode<synchronous>, transform_indices = @transform_1, window_bounds = array<i64: 128, 128>}, {transform_indices = @transform_2, window_bounds = array<i64: 16, 128>}]} {
    %c0 = arith.constant 0 : index
    %c0_0 = arith.constant 0 : index
    %0 = vector.load %arg1[%c0, %c0_0] : memref<16x128xbf16, #tpu.memory_space<vmem>>, vector<16x128xbf16>
    %c0_1 = arith.constant 0 : index
    %c0_2 = arith.constant 0 : index
    %1 = vector.load %arg2[%c0_1, %c0_2] : memref<128x128xbf16, #tpu.memory_space<vmem>>, vector<128x128xbf16>
    %cst = arith.constant dense<0.000000e+00> : vector<16x128xf32>
    %2 = tpu.matmul %0, %1, %cst {dimension_numbers = #tpu.dot_dimension_numbers<[1], [0], [0], [1], [0, 0, 1, 1], [], []>} : vector<16x128xbf16>, vector<128x128xbf16>, vector<16x128xf32> -> vector<16x128xf32>
    %c0_3 = arith.constant 0 : index
    %c0_4 = arith.constant 0 : index
    %3 = vector.load %arg3[%c0_3, %c0_4] : memref<16x128xf32, #tpu.memory_space<vmem>>, vector<16x128xf32>
    tpu.vector_store %arg3[%c0_3, %c0_4], %2 {strides = array<i32>} : memref<16x128xf32, #tpu.memory_space<vmem>>, vector<16x128xf32>,
    return
  }
  func.func @transform_0(%arg0: i32) -> (i32, i32) {
    %c0_i32 = arith.constant 0 : i32
    %c0_i32_0 = arith.constant 0 : i32
    return %arg0, %c0_i32 : i32, i32
  }
  func.func @transform_1(%arg0: i32) -> (i32, i32) {
    %c0_i32 = arith.constant 0 : i32
    %c0_i32_0 = arith.constant 0 : i32
    %c0_i32_1 = arith.constant 0 : i32
    return %c0_i32, %c0_i32_0 : i32, i32
  }
  func.func @transform_2(%arg0: i32) -> (i32, i32) {
    %c0_i32 = arith.constant 0 : i32
    %c0_i32_0 = arith.constant 0 : i32
    return %arg0, %c0_i32 : i32, i32
  }
}

</mosaic_0001>

<llo_original>
// kernel: tpu_custom_call.1
$region0: #{tpu_custom_call.1}
  #allocation0 [shape = 'u32[]', space=smem, size = 0x4, offset = 0x4, fixed_abs, tag = 'smem constant byte address 0x4 - core index']
  #allocation1 [shape = 'u32[144,128]{1,0:T(1,128)}', space=vmem, size = 0x12000, scoped, tag = 'internal scratch']
  %s0 = inlined_call_operand.hbm [shape: bf16[16,128], index: 0, kind: input, shape index: {}]
  %s1 = inlined_call_operand.hbm [shape: bf16[128,128], index: 1, kind: input, shape index: {}]
  %s2 = inlined_call_operand.hbm [shape: f32[16,128], index: 2, kind: output, shape index: {}]
  %s3 = sld [smem:[#allocation0]]
  $region26: #{tpu_custom_call.1} parent=0
    _
  %s5 = ssub.s32 1, %s3
  %s6 = scalar_select 0, %s5, %s3
  $region1: #{tpu_custom_call.1} parent=0
    #allocation2 [shape = 'u8[4096]{0}', space=vmem, size = 0x1000, scoped, tag = 'input window, operand 0, single buffered']
    #allocation3 [shape = 's32[1]{0}', space=sflag, size = 0x4, scoped, tag = 'scoped memory for tpu_custom_call.1']
    #allocation4 [shape = 's32[1]{0}', space=sflag, size = 0x4, scoped, tag = 'scoped memory for tpu_custom_call.1']
    #allocation5 [shape = 'u8[32768]{0}', space=vmem, size = 0x8000, scoped, tag = 'input window, operand 1, single buffered']
    #allocation6 [shape = 's32[1]{0}', space=sflag, size = 0x4, scoped, tag = 'scoped memory for tpu_custom_call.1']
    #allocation7 [shape = 'u8[8192]{0}', space=vmem, size = 0x2000, scoped, tag = 'output window, operand 0, single buffered']
    %7 = vsyncpa [#allocation3], 0
    %8 = vsyncpa [#allocation6], 0
    %9 = vsyncpa [#allocation4], 0
    // Predicated region
    $region2: #{tpu_custom_call.1} parent=1 // pred_check
      _
    $region3: #{tpu_custom_call.1} parent=1 // pred_check_branch
      %11 = sbr.rel (0) target = $region5
    $region4: #{tpu_custom_call.1} parent=1 // pred_region
      %s13 = ssub.s32 128, 128
      %14 = vsyncadd [#allocation3], %s13
      %s15 = sshll.u32 [#allocation2], 4
      %s16 = int_to_ptr.vmem [resolvable:$true] %s15
      %21 = dma.hbm_to_vmem [thread:$0]  %s0, 128, %s16, [#allocation3], 64, 64, 4
    $region5: #{tpu_custom_call.1} parent=1 // pred_fallthru
      _
    // Predicated region
    $region6: #{tpu_custom_call.1} parent=1 // pred_check
      _
    $region7: #{tpu_custom_call.1} parent=1 // pred_check_branch
      %23 = sbr.rel (0) target = $region9
    $region8: #{tpu_custom_call.1} parent=1 // pred_region
      %s25 = ssub.s32 1024, 1024
      %26 = vsyncadd [#allocation6], %s25
      %s27 = sshll.u32 [#allocation5], 4
      %s28 = int_to_ptr.vmem [resolvable:$true] %s27
      %33 = dma.hbm_to_vmem [thread:$0]  %s1, 1024, %s28, [#allocation6], 64, 64, 4
    $region9: #{tpu_custom_call.1} parent=1 // pred_fallthru
      _
    // Predicated region
    $region10: #{tpu_custom_call.1} parent=1 // pred_check
      _
    $region11: #{tpu_custom_call.1} parent=1 // pred_check_branch
      %35 = sbr.rel (0) target = $region13
    $region12: #{tpu_custom_call.1} parent=1 // pred_region
      %36 = dma.done [#allocation3], 128
    $region13: #{tpu_custom_call.1} parent=1 // pred_fallthru
      _
    // Predicated region
    $region14: #{tpu_custom_call.1} parent=1 // pred_check
      _
    $region15: #{tpu_custom_call.1} parent=1 // pred_check_branch
      %38 = sbr.rel (0) target = $region17
    $region16: #{tpu_custom_call.1} parent=1 // pred_region
      %39 = dma.done [#allocation6], 1024
    $region17: #{tpu_custom_call.1} parent=1 // pred_fallthru
      _
    %v41 = vld [vmem:[#allocation2] sm:$0xf]
    %v42 = vld [vmem:[#allocation2 + $0x4] sm:$0xf]
    %v43 = vld [vmem:[#allocation5] sm:$0xf]
    %v44 = vld [vmem:[#allocation5 + $0x4] sm:$0xf]
    %v45 = vld [vmem:[#allocation5 + $0x8] sm:$0xf]
    %v46 = vld [vmem:[#allocation5 + $0xc] sm:$0xf]
    %v47 = vld [vmem:[#allocation5 + $0x10] sm:$0xf]
    %v48 = vld [vmem:[#allocation5 + $0x14] sm:$0xf]
    %v49 = vld [vmem:[#allocation5 + $0x18] sm:$0xf]
    %v50 = vld [vmem:[#allocation5 + $0x1c] sm:$0xf]
    %v51 = vld [vmem:[#allocation5 + $0x20] sm:$0xf]
    %v52 = vld [vmem:[#allocation5 + $0x24] sm:$0xf]
    %v53 = vld [vmem:[#allocation5 + $0x28] sm:$0xf]
    %v54 = vld [vmem:[#allocation5 + $0x2c] sm:$0xf]
    %v55 = vld [vmem:[#allocation5 + $0x30] sm:$0xf]
    %v56 = vld [vmem:[#allocation5 + $0x34] sm:$0xf]
    %v57 = vld [vmem:[#allocation5 + $0x38] sm:$0xf]
    %v58 = vld [vmem:[#allocation5 + $0x3c] sm:$0xf]
    %v61 = vunpack.c.l.b16 %v41
    %v62 = vunpack.c.l.b16 %v42
    %v63 = vpack.c.b16 %v62, %v61
    %v81 = vunpack.c.l.b16 %v43
    %v82 = vunpack.c.l.b16 %v44
    %v83 = vunpack.c.l.b16 %v45
    %v84 = vunpack.c.l.b16 %v46
    %v85 = vunpack.c.l.b16 %v47
    %v86 = vunpack.c.l.b16 %v48
    %v87 = vunpack.c.l.b16 %v49
    %v88 = vunpack.c.l.b16 %v50
    %v89 = vunpack.c.l.b16 %v51
    %v90 = vunpack.c.l.b16 %v52
    %v91 = vunpack.c.l.b16 %v53
    %v92 = vunpack.c.l.b16 %v54
    %v93 = vunpack.c.l.b16 %v55
    %v94 = vunpack.c.l.b16 %v56
    %v95 = vunpack.c.l.b16 %v57
    %v96 = vunpack.c.l.b16 %v58
    %v97 = vpack.c.b16 %v82, %v81
    %v98 = vpack.c.b16 %v84, %v83
    %v99 = vpack.c.b16 %v86, %v85
    %v100 = vpack.c.b16 %v88, %v87
    %v101 = vpack.c.b16 %v90, %v89
    %v102 = vpack.c.b16 %v92, %v91
    %v103 = vpack.c.b16 %v94, %v93
    %v104 = vpack.c.b16 %v96, %v95
    %113 = vmatprep.subr.bf16.mxu0 0
    %114 = vmatpush1.bf16.msra.mxu0 %v97
    %115 = vmatprep.subr.bf16.mxu0 0
    %116 = vmatpush1.bf16.msra.mxu0 %v98
    %117 = vmatprep.subr.bf16.mxu0 0
    %118 = vmatpush1.bf16.msra.mxu0 %v99
    %119 = vmatprep.subr.bf16.mxu0 0
    %120 = vmatpush1.bf16.msra.mxu0 %v100
    %121 = vmatprep.subr.bf16.mxu0 0
    %122 = vmatpush1.bf16.msra.mxu0 %v101
    %123 = vmatprep.subr.bf16.mxu0 0
    %124 = vmatpush1.bf16.msra.mxu0 %v102
    %125 = vmatprep.subr.bf16.mxu0 0
    %126 = vmatpush1.bf16.msra.mxu0 %v103
    %127 = vmatprep.subr.bf16.mxu0 0
    %128 = vmatpush1.bf16.msra.mxu0 %v104
    %129 = vmatprep.subr.bf16.mxu0 0
    %130 = vmatpush1.bf16.msra.mxu0 0
    %131 = vmatprep.subr.bf16.mxu0 0
    %132 = vmatpush1.bf16.msra.mxu0 0
    %133 = vmatprep.subr.bf16.mxu0 0
    %134 = vmatpush1.bf16.msra.mxu0 0
    %135 = vmatprep.subr.bf16.mxu0 0
    %136 = vmatpush1.bf16.msra.mxu0 0
    %137 = vmatprep.subr.bf16.mxu0 0
    %138 = vmatpush1.bf16.msra.mxu0 0
    %139 = vmatprep.subr.bf16.mxu0 0
    %140 = vmatpush1.bf16.msra.mxu0 0
    %141 = vmatprep.subr.bf16.mxu0 0
    %142 = vmatpush1.bf16.msra.mxu0 0
    %143 = vmatprep.subr.bf16.mxu0 0
    %144 = vmatpush1.bf16.msra.mxu0 0
    %145 = vmatprep.mubr.bf16.mxu0 0
    %146 = vmatmul.mubr.bf16.gmra.mrb[0].mxu0 %v63
    %v147 = vpop.f32.mrb[0].mxu0
    %v148 = vadd.f32 0.0, %v147
    %v149 = vpop.f32.mrb[0].mxu0
    %v150 = vpop.f32.mrb[0].mxu0
    %v151 = vadd.f32 0.0, %v150
    %v152 = vpop.f32.mrb[0].mxu0
    %153 = vdwg.mxu0
    %154 = vst [vmem:[#allocation7] sm:$0xff] %v148
    %155 = vst [vmem:[#allocation7 + $0x8] sm:$0xff] %v151
    // Predicated region
    $region18: #{tpu_custom_call.1} parent=1 // pred_check
      _
    $region19: #{tpu_custom_call.1} parent=1 // pred_check_branch
      %157 = sbr.rel (0) target = $region21
    $region20: #{tpu_custom_call.1} parent=1 // pred_region
      %s159 = ssub.s32 256, 256
      %160 = vsyncadd [#allocation4], %s159
      %s161 = sshll.u32 [#allocation7], 4
      %s162 = int_to_ptr.vmem [resolvable:$true] %s161
      %167 = dma.vmem_to_hbm [thread:$0]  %s162, 256, %s2, [#allocation4], 128, 128, 8
    $region21: #{tpu_custom_call.1} parent=1 // pred_fallthru
      _
    // Predicated region
    $region22: #{tpu_custom_call.1} parent=1 // pred_check
      _
    $region23: #{tpu_custom_call.1} parent=1 // pred_check_branch
      %169 = sbr.rel (0) target = $region25
    $region24: #{tpu_custom_call.1} parent=1 // pred_region
      %170 = dma.done [#allocation4], 256
    $region25: #{tpu_custom_call.1} parent=1 // pred_fallthru
      _
    %171 = vsyncpa [#allocation3], 1
    %172 = vsyncpa [#allocation6], 1
    %173 = vsyncpa [#allocation4], 1

</llo_original>
